<compile_context>
chip_gen: v5e
topology: v5e:2x2
jax: 0.10.0
libtpu: 0.0.40
codegen_flags: <defaults>
</compile_context>

<pallas_src>
import functools

import jax
import jax.numpy as jnp
from jax.experimental import pallas as pl
from jax.experimental.pallas import tpu as pltpu

EPS = 1e-3                # nn.BatchNorm2d(eps=0.001)
MM_DTYPE = jnp.float32    # set to jnp.bfloat16 on v6e/v7x for higher MXU
                          # throughput (loosens the 1e-4 test tolerance)


def basic_block_kernel(x_ref, b1_ref, g1_ref, be1_ref, b2_ref, g2_ref, be2_ref,
                       gmat_ref, o_ref, *, H, W):
    R, L = x_ref.shape                     # R = N*H rows, L = W*C lanes
    inv_count = 1.0 / float(R * W)         # per-channel element count = N*H*W

    x = x_ref[...]                         # (R, L) lane-dense
    gmat = gmat_ref[...]                   # (L, L) channel-gather matrix

    # Valid-neighbor masks along H (stacked images must not bleed into each
    # other, and the conv zero-pads the top/bottom rows of every image).
    h_idx = jax.lax.broadcasted_iota(jnp.int32, (R, L), 0) % H
    not_top = h_idx != 0                   # row r may read row r-1
    not_bot = h_idx != (H - 1)             # row r may read row r+1

    def shift_rows(a, dh):
        # Row r of the result holds a[r + dh]; zero across image boundaries.
        if dh == 0:
            return a
        rolled = pltpu.roll(a, shift=(-dh) % R, axis=0)   # XLU sublane rotate
        mask = not_bot if dh == 1 else not_top
        return jnp.where(mask, rolled, 0.0)

    def conv3x3(a, b_ref):
        # 3 lane-dense (R, L) x (L, L) MXU matmuls.  The kw taps and the
        # W-direction zero padding live inside the banded matrices b_ref[kh].
        acc = jnp.dot(a.astype(MM_DTYPE), b_ref[1].astype(MM_DTYPE),
                      preferred_element_type=jnp.float32)
        acc = acc + jnp.dot(shift_rows(a, -1).astype(MM_DTYPE),
                            b_ref[0].astype(MM_DTYPE),
                            preferred_element_type=jnp.float32)
        acc = acc + jnp.dot(shift_rows(a, 1).astype(MM_DTYPE),
                            b_ref[2].astype(MM_DTYPE),
                            preferred_element_type=jnp.float32)
        return acc

    def batchnorm(y, gamma_t, beta_t):
        # Training-mode BN (biased batch stats over N,H,W), fused scale/shift.
        s = jnp.sum(y, axis=0, keepdims=True)        # (1, L) sublane reduce
        ss = jnp.sum(y * y, axis=0, keepdims=True)
        mean = jnp.dot(s, gmat, preferred_element_type=jnp.float32) * inv_count
        ex2 = jnp.dot(ss, gmat, preferred_element_type=jnp.float32) * inv_count
        var = ex2 - mean * mean
        scale = gamma_t * jax.lax.rsqrt(var + EPS)   # rsqrt -> EUP (free slot)
        shift = beta_t - scale * mean
        return y * scale + shift                     # 2 VALU ops / element

    out = conv3x3(x, b1_ref)                               # conv1
    out = jnp.maximum(batchnorm(out, g1_ref[...], be1_ref[...]), 0.0)  # bn1+relu
    out = conv3x3(out, b2_ref)                             # conv2
    out = batchnorm(out, g2_ref[...], be2_ref[...])        # bn2
    o_ref[...] = jnp.maximum(out + x, 0.0)                 # residual + relu
                                                           # (full-width store)


def basic_block(x, w1, g1, b1, w2, g2, b2):
    N, H, W, C = x.shape
    P = w1.shape[-1]
    assert P == C, "stride=1, downsample=None requires inplanes == planes"
    L = W * C
    R = N * H
    f32 = jnp.float32

    # ---------------- wrapper-side layout plumbing (constant per weight) ----
    # Lane-dense activation view: (N,H,W,C) row-major -> (N*H, W*C).
    x2d = x.reshape(R, L).astype(f32)

    # Fold the 3 kw taps (and the W-boundary zero padding) of each kh row of
    # the filter into a banded (W*C, W*P) matrix:
    #   B[kh][w_in*C + c, w_out*P + p] = w[kh, (w_in - w_out) + 1, c, p]
    def banded(w):
        mats = []
        for kh in range(3):
            m = jnp.zeros((L, W * P), f32)
            for kw in range(3):
                dw = kw - 1
                m = m + jnp.kron(jnp.eye(W, k=-dw, dtype=f32),
                                 w[kh, kw].astype(f32))
            mats.append(m)
        return jnp.stack(mats)                    # (3, L, L)

    B1, B2 = banded(w1), banded(w2)

    # Channel-gather matrix: (rowsum @ G)[w*C + c] = total over channel c,
    # broadcast to every w position (keeps BN stats lane-aligned in-kernel).
    G = jnp.kron(jnp.ones((W, W), f32), jnp.eye(C, dtype=f32))

    # gamma/beta tiled to the lane layout, as 2-D (1, L) rows.
    g1t = jnp.tile(g1.astype(f32), W)[None, :]
    b1t = jnp.tile(b1.astype(f32), W)[None, :]
    g2t = jnp.tile(g2.astype(f32), W)[None, :]
    b2t = jnp.tile(b2.astype(f32), W)[None, :]

    def full(shape):
        n = len(shape)
        return pl.BlockSpec(shape, lambda i, n=n: (0,) * n)

    # Explicit VMEM budget (all buffers are tiny here; cap well under the
    # smallest default scoped limit so shapes growing won't silently OOM).
    buf_bytes = 4 * (2 * R * L + 2 * 3 * L * L + L * L + 4 * L)
    vmem_limit = int(min(32 * 1024 * 1024, 4 * buf_bytes + (4 << 20)))

    out2d = pl.pallas_call(
        functools.partial(basic_block_kernel, H=H, W=W),
        out_shape=jax.ShapeDtypeStruct((R, L), f32),
        grid=(1,),
        in_specs=[
            full((R, L)),                      # x (lane-dense)
            full((3, L, L)),                   # banded conv1 weights
            full((1, L)), full((1, L)),        # gamma1, beta1 (tiled)
            full((3, L, L)),                   # banded conv2 weights
            full((1, L)), full((1, L)),        # gamma2, beta2 (tiled)
            full((L, L)),                      # channel-gather matrix
        ],
        out_specs=full((R, L)),
        compiler_params=pltpu.CompilerParams(
            dimension_semantics=("arbitrary",),
            vmem_limit_bytes=vmem_limit),
    )(x2d, B1, g1t, b1t, B2, g2t, b2t, G)

    return out2d.reshape(N, H, W, C)


def reference_forward(x, w1, g1, b1, w2, g2, b2):
    def conv(inp, w):
        return jax.lax.conv_general_dilated(
            inp, w, window_strides=(1, 1), padding="SAME",
            dimension_numbers=("NHWC", "HWIO", "NHWC"))

    def bn(y, g, b):
        mean = y.mean(axis=(0, 1, 2), keepdims=True)
        var = ((y - mean) ** 2).mean(axis=(0, 1, 2), keepdims=True)
        return g * (y - mean) * jax.lax.rsqrt(var + EPS) + b

    out = jax.nn.relu(bn(conv(x, w1), g1, b1))
    out = bn(conv(out, w2), g2, b2)
    return jax.nn.relu(out + x)


if __name__ == "__main__":
    N, H, W, C = 2, 16, 16, 8   # inplanes = planes = 8, stride = 1; W*C = 128
    key = jax.random.PRNGKey(0)
    kx, k1, k2, k3, k4, k5, k6 = jax.random.split(key, 7)

    x = jax.random.normal(kx, (N, H, W, C), jnp.float32)
    w1 = 0.1 * jax.random.normal(k1, (3, 3, C, C), jnp.float32)
    g1 = 1.0 + 0.1 * jax.random.normal(k2, (C,), jnp.float32)
    b1 = 0.1 * jax.random.normal(k3, (C,), jnp.float32)
    w2 = 0.1 * jax.random.normal(k4, (3, 3, C, C), jnp.float32)
    g2 = 1.0 + 0.1 * jax.random.normal(k5, (C,), jnp.float32)
    b2 = 0.1 * jax.random.normal(k6, (C,), jnp.float32)

    out = basic_block(x, w1, g1, b1, w2, g2, b2)
    out = jax.block_until_ready(out)

    ref = reference_forward(x, w1, g1, b1, w2, g2, b2)
    assert out.shape == (N, H, W, C)
    assert jnp.allclose(out, ref, atol=1e-4, rtol=1e-4), "mismatch vs JAX reference"

    print("KERNEL_OK")
</pallas_src>

<mosaic_0001>
module attributes {stable_mosaic.version = 11 : i64} {
  func.func @basic_block_kernel(%arg0: i32, %arg1: memref<32x128xf32, #tpu.memory_space<vmem>>, %arg2: memref<3x128x128xf32, #tpu.memory_space<vmem>>, %arg3: memref<1x128xf32, #tpu.memory_space<vmem>>, %arg4: memref<1x128xf32, #tpu.memory_space<vmem>>, %arg5: memref<3x128x128xf32, #tpu.memory_space<vmem>>, %arg6: memref<1x128xf32, #tpu.memory_space<vmem>>, %arg7: memref<1x128xf32, #tpu.memory_space<vmem>>, %arg8: memref<128x128xf32, #tpu.memory_space<vmem>>, %arg9: memref<32x128xf32, #tpu.memory_space<vmem>>) attributes {dimension_semantics = [#tpu.dimension_semantics<arbitrary>], iteration_bounds = array<i64: 1>, scalar_prefetch = 0 : i64, scratch_operands = 0 : i64, tpu.core_type = #tpu.core_type<tc>, window_params = [{pipeline_mode = #tpu.pipeline_mode<synchronous>, transform_indices = @transform_0, window_bounds = array<i64: 32, 128>}, {pipeline_mode = #tpu.pipeline_mode<synchronous>, transform_indices = @transform_1, window_bounds = array<i64: 3, 128, 128>}, {pipeline_mode = #tpu.pipeline_mode<synchronous>, transform_indices = @transform_2, window_bounds = array<i64: 1, 128>}, {pipeline_mode = #tpu.pipeline_mode<synchronous>, transform_indices = @transform_3, window_bounds = array<i64: 1, 128>}, {pipeline_mode = #tpu.pipeline_mode<synchronous>, transform_indices = @transform_4, window_bounds = array<i64: 3, 128, 128>}, {pipeline_mode = #tpu.pipeline_mode<synchronous>, transform_indices = @transform_5, window_bounds = array<i64: 1, 128>}, {pipeline_mode = #tpu.pipeline_mode<synchronous>, transform_indices = @transform_6, window_bounds = array<i64: 1, 128>}, {pipeline_mode = #tpu.pipeline_mode<synchronous>, transform_indices = @transform_7, window_bounds = array<i64: 128, 128>}, {pipeline_mode = #tpu.pipeline_mode<synchronous>, transform_indices = @transform_8, window_bounds = array<i64: 32, 128>}]} {
    %c0 = arith.constant 0 : index
    %c0_0 = arith.constant 0 : index
    %0 = vector.load %arg1[%c0, %c0_0] : memref<32x128xf32, #tpu.memory_space<vmem>>, vector<32x128xf32>
    %c0_1 = arith.constant 0 : index
    %c0_2 = arith.constant 0 : index
    %1 = vector.load %arg8[%c0_1, %c0_2] : memref<128x128xf32, #tpu.memory_space<vmem>>, vector<128x128xf32>
    %2 = tpu.iota {dimensions = array<i32: 0>} : vector<32x128xi32>
    %c16_i32 = arith.constant 16 : i32
    %c0_i32 = arith.constant 0 : i32
    %3 = arith.cmpi eq, %c16_i32, %c0_i32 : i32
    %c1_i32 = arith.constant 1 : i32
    %4 = arith.select %3, %c1_i32, %c16_i32 : i32
    %5 = vector.broadcast %4 : i32 to vector<32x128xi32>
    %6 = arith.remsi %2, %5 : vector<32x128xi32>
    %c0_i32_3 = arith.constant 0 : i32
    %7 = vector.broadcast %c0_i32_3 : i32 to vector<32x128xi32>
    %8 = arith.cmpi ne, %6, %7 : vector<32x128xi32>
    %c0_i32_4 = arith.constant 0 : i32
    %9 = vector.broadcast %c0_i32_4 : i32 to vector<32x128xi32>
    %10 = arith.cmpi slt, %6, %9 : vector<32x128xi32>
    %c0_i32_5 = arith.constant 0 : i32
    %11 = arith.cmpi slt, %4, %c0_i32_5 : i32
    %12 = vector.broadcast %11 : i1 to vector<32x128xi1>
    %13 = vector.broadcast %12 : vector<32x128xi1> to vector<32x128xi1>
    %14 = arith.xori %10, %13 : vector<32x128xi1>
    %15 = arith.andi %14, %8 : vector<32x128xi1>
    %16 = vector.broadcast %4 : i32 to vector<32x128xi32>
    %17 = arith.addi %6, %16 : vector<32x128xi32>
    %18 = arith.select %15, %17, %6 : vector<32x128xi1>, vector<32x128xi32>
    %c0_i32_6 = arith.constant 0 : i32
    %19 = vector.broadcast %c0_i32_6 : i32 to vector<32x128xi32>
    %20 = arith.cmpi ne, %18, %19 : vector<32x128xi32>
    %c15_i32 = arith.constant 15 : i32
    %21 = vector.broadcast %c15_i32 : i32 to vector<32x128xi32>
    %22 = arith.cmpi ne, %18, %21 : vector<32x128xi32>
    %c1 = arith.constant 1 : index
    %c0_7 = arith.constant 0 : index
    %c0_8 = arith.constant 0 : index
    %23 = vector.load %arg2[%c1, %c0_7, %c0_8] : memref<3x128x128xf32, #tpu.memory_space<vmem>>, vector<1x128x128xf32>
    %24 = vector.shape_cast %23 : vector<1x128x128xf32> to vector<128x128xf32>
    %cst = arith.constant dense<0.000000e+00> : vector<32x128xf32>
    %25 = tpu.matmul %0, %24, %cst {dimension_numbers = #tpu.dot_dimension_numbers<[1], [0], [0], [1], [0, 0, 1, 1], [], []>} : vector<32x128xf32>, vector<128x128xf32>, vector<32x128xf32> -> vector<32x128xf32>
    %c1_i32_9 = arith.constant 1 : i32
    %26 = tpu.dynamic_rotate %0 by %c1_i32_9 dim 0 : vector<32x128xf32>, i32 -> vector<32x128xf32>
    %cst_10 = arith.constant 0.000000e+00 : f32
    %27 = vector.broadcast %cst_10 : f32 to vector<32x128xf32>
    %28 = arith.select %20, %26, %27 : vector<32x128xi1>, vector<32x128xf32>
    %c0_11 = arith.constant 0 : index
    %c0_12 = arith.constant 0 : index
    %c0_13 = arith.constant 0 : index
    %29 = vector.load %arg2[%c0_11, %c0_12, %c0_13] : memref<3x128x128xf32, #tpu.memory_space<vmem>>, vector<1x128x128xf32>
    %30 = vector.shape_cast %29 : vector<1x128x128xf32> to vector<128x128xf32>
    %cst_14 = arith.constant dense<0.000000e+00> : vector<32x128xf32>
    %31 = tpu.matmul %28, %30, %cst_14 {dimension_numbers = #tpu.dot_dimension_numbers<[1], [0], [0], [1], [0, 0, 1, 1], [], []>} : vector<32x128xf32>, vector<128x128xf32>, vector<32x128xf32> -> vector<32x128xf32>
    %32 = arith.addf %25, %31 : vector<32x128xf32>
    %c31_i32 = arith.constant 31 : i32
    %33 = tpu.dynamic_rotate %0 by %c31_i32 dim 0 : vector<32x128xf32>, i32 -> vector<32x128xf32>
    %cst_15 = arith.constant 0.000000e+00 : f32
    %34 = vector.broadcast %cst_15 : f32 to vector<32x128xf32>
    %35 = arith.select %22, %33, %34 : vector<32x128xi1>, vector<32x128xf32>
    %c2 = arith.constant 2 : index
    %c0_16 = arith.constant 0 : index
    %c0_17 = arith.constant 0 : index
    %36 = vector.load %arg2[%c2, %c0_16, %c0_17] : memref<3x128x128xf32, #tpu.memory_space<vmem>>, vector<1x128x128xf32>
    %37 = vector.shape_cast %36 : vector<1x128x128xf32> to vector<128x128xf32>
    %cst_18 = arith.constant dense<0.000000e+00> : vector<32x128xf32>
    %38 = tpu.matmul %35, %37, %cst_18 {dimension_numbers = #tpu.dot_dimension_numbers<[1], [0], [0], [1], [0, 0, 1, 1], [], []>} : vector<32x128xf32>, vector<128x128xf32>, vector<32x128xf32> -> vector<32x128xf32>
    %39 = arith.addf %32, %38 : vector<32x128xf32>
    %c0_19 = arith.constant 0 : index
    %c0_20 = arith.constant 0 : index
    %40 = vector.load %arg3[%c0_19, %c0_20] : memref<1x128xf32, #tpu.memory_space<vmem>>, vector<1x128xf32>
    %c0_21 = arith.constant 0 : index
    %c0_22 = arith.constant 0 : index
    %41 = vector.load %arg4[%c0_21, %c0_22] : memref<1x128xf32, #tpu.memory_space<vmem>>, vector<1x128xf32>
    %cst_23 = arith.constant dense<0.000000e+00> : vector<128xf32>
    %42 = vector.multi_reduction <add>, %39, %cst_23 [0] : vector<32x128xf32> to vector<128xf32>
    %43 = vector.shape_cast %42 : vector<128xf32> to vector<1x128xf32>
    %44 = arith.mulf %39, %39 : vector<32x128xf32>
    %cst_24 = arith.constant dense<0.000000e+00> : vector<128xf32>
    %45 = vector.multi_reduction <add>, %44, %cst_24 [0] : vector<32x128xf32> to vector<128xf32>
    %46 = vector.shape_cast %45 : vector<128xf32> to vector<1x128xf32>
    %cst_25 = arith.constant dense<0.000000e+00> : vector<1x128xf32>
    %47 = tpu.matmul %43, %1, %cst_25 {dimension_numbers = #tpu.dot_dimension_numbers<[1], [0], [0], [1], [0, 0, 1, 1], [], []>} : vector<1x128xf32>, vector<128x128xf32>, vector<1x128xf32> -> vector<1x128xf32>
    %cst_26 = arith.constant 0.001953125 : f32
    %48 = vector.broadcast %cst_26 : f32 to vector<1x128xf32>
    %49 = arith.mulf %47, %48 : vector<1x128xf32>
    %cst_27 = arith.constant dense<0.000000e+00> : vector<1x128xf32>
    %50 = tpu.matmul %46, %1, %cst_27 {dimension_numbers = #tpu.dot_dimension_numbers<[1], [0], [0], [1], [0, 0, 1, 1], [], []>} : vector<1x128xf32>, vector<128x128xf32>, vector<1x128xf32> -> vector<1x128xf32>
    %cst_28 = arith.constant 0.001953125 : f32
    %51 = vector.broadcast %cst_28 : f32 to vector<1x128xf32>
    %52 = arith.mulf %50, %51 : vector<1x128xf32>
    %53 = arith.mulf %49, %49 : vector<1x128xf32>
    %54 = arith.subf %52, %53 : vector<1x128xf32>
    %cst_29 = arith.constant 1.000000e-03 : f32
    %55 = vector.broadcast %cst_29 : f32 to vector<1x128xf32>
    %56 = arith.addf %54, %55 : vector<1x128xf32>
    %57 = math.rsqrt %56 : vector<1x128xf32>
    %58 = arith.mulf %40, %57 : vector<1x128xf32>
    %59 = arith.mulf %58, %49 : vector<1x128xf32>
    %60 = arith.subf %41, %59 : vector<1x128xf32>
    %61 = vector.broadcast %58 : vector<1x128xf32> to vector<32x128xf32>
    %62 = arith.mulf %39, %61 : vector<32x128xf32>
    %63 = vector.broadcast %60 : vector<1x128xf32> to vector<32x128xf32>
    %64 = arith.addf %62, %63 : vector<32x128xf32>
    %cst_30 = arith.constant 0.000000e+00 : f32
    %65 = vector.broadcast %cst_30 : f32 to vector<32x128xf32>
    %66 = arith.maximumf %64, %65 : vector<32x128xf32>
    %c1_31 = arith.constant 1 : index
    %c0_32 = arith.constant 0 : index
    %c0_33 = arith.constant 0 : index
    %67 = vector.load %arg5[%c1_31, %c0_32, %c0_33] : memref<3x128x128xf32, #tpu.memory_space<vmem>>, vector<1x128x128xf32>
    %68 = vector.shape_cast %67 : vector<1x128x128xf32> to vector<128x128xf32>
    %cst_34 = arith.constant dense<0.000000e+00> : vector<32x128xf32>
    %69 = tpu.matmul %66, %68, %cst_34 {dimension_numbers = #tpu.dot_dimension_numbers<[1], [0], [0], [1], [0, 0, 1, 1], [], []>} : vector<32x128xf32>, vector<128x128xf32>, vector<32x128xf32> -> vector<32x128xf32>
    %c1_i32_35 = arith.constant 1 : i32
    %70 = tpu.dynamic_rotate %66 by %c1_i32_35 dim 0 : vector<32x128xf32>, i32 -> vector<32x128xf32>
    %cst_36 = arith.constant 0.000000e+00 : f32
    %71 = vector.broadcast %cst_36 : f32 to vector<32x128xf32>
    %72 = arith.select %20, %70, %71 : vector<32x128xi1>, vector<32x128xf32>
    %c0_37 = arith.constant 0 : index
    %c0_38 = arith.constant 0 : index
    %c0_39 = arith.constant 0 : index
    %73 = vector.load %arg5[%c0_37, %c0_38, %c0_39] : memref<3x128x128xf32, #tpu.memory_space<vmem>>, vector<1x128x128xf32>
    %74 = vector.shape_cast %73 : vector<1x128x128xf32> to vector<128x128xf32>
    %cst_40 = arith.constant dense<0.000000e+00> : vector<32x128xf32>
    %75 = tpu.matmul %72, %74, %cst_40 {dimension_numbers = #tpu.dot_dimension_numbers<[1], [0], [0], [1], [0, 0, 1, 1], [], []>} : vector<32x128xf32>, vector<128x128xf32>, vector<32x128xf32> -> vector<32x128xf32>
    %76 = arith.addf %69, %75 : vector<32x128xf32>
    %c31_i32_41 = arith.constant 31 : i32
    %77 = tpu.dynamic_rotate %66 by %c31_i32_41 dim 0 : vector<32x128xf32>, i32 -> vector<32x128xf32>
    %cst_42 = arith.constant 0.000000e+00 : f32
    %78 = vector.broadcast %cst_42 : f32 to vector<32x128xf32>
    %79 = arith.select %22, %77, %78 : vector<32x128xi1>, vector<32x128xf32>
    %c2_43 = arith.constant 2 : index
    %c0_44 = arith.constant 0 : index
    %c0_45 = arith.constant 0 : index
    %80 = vector.load %arg5[%c2_43, %c0_44, %c0_45] : memref<3x128x128xf32, #tpu.memory_space<vmem>>, vector<1x128x128xf32>
    %81 = vector.shape_cast %80 : vector<1x128x128xf32> to vector<128x128xf32>
    %cst_46 = arith.constant dense<0.000000e+00> : vector<32x128xf32>
    %82 = tpu.matmul %79, %81, %cst_46 {dimension_numbers = #tpu.dot_dimension_numbers<[1], [0], [0], [1], [0, 0, 1, 1], [], []>} : vector<32x128xf32>, vector<128x128xf32>, vector<32x128xf32> -> vector<32x128xf32>
    %83 = arith.addf %76, %82 : vector<32x128xf32>
    %c0_47 = arith.constant 0 : index
    %c0_48 = arith.constant 0 : index
    %84 = vector.load %arg6[%c0_47, %c0_48] : memref<1x128xf32, #tpu.memory_space<vmem>>, vector<1x128xf32>
    %c0_49 = arith.constant 0 : index
    %c0_50 = arith.constant 0 : index
    %85 = vector.load %arg7[%c0_49, %c0_50] : memref<1x128xf32, #tpu.memory_space<vmem>>, vector<1x128xf32>
    %cst_51 = arith.constant dense<0.000000e+00> : vector<128xf32>
    %86 = vector.multi_reduction <add>, %83, %cst_51 [0] : vector<32x128xf32> to vector<128xf32>
    %87 = vector.shape_cast %86 : vector<128xf32> to vector<1x128xf32>
    %88 = arith.mulf %83, %83 : vector<32x128xf32>
    %cst_52 = arith.constant dense<0.000000e+00> : vector<128xf32>
    %89 = vector.multi_reduction <add>, %88, %cst_52 [0] : vector<32x128xf32> to vector<128xf32>
    %90 = vector.shape_cast %89 : vector<128xf32> to vector<1x128xf32>
    %cst_53 = arith.constant dense<0.000000e+00> : vector<1x128xf32>
    %91 = tpu.matmul %87, %1, %cst_53 {dimension_numbers = #tpu.dot_dimension_numbers<[1], [0], [0], [1], [0, 0, 1, 1], [], []>} : vector<1x128xf32>, vector<128x128xf32>, vector<1x128xf32> -> vector<1x128xf32>
    %cst_54 = arith.constant 0.001953125 : f32
    %92 = vector.broadcast %cst_54 : f32 to vector<1x128xf32>
    %93 = arith.mulf %91, %92 : vector<1x128xf32>
    %cst_55 = arith.constant dense<0.000000e+00> : vector<1x128xf32>
    %94 = tpu.matmul %90, %1, %cst_55 {dimension_numbers = #tpu.dot_dimension_numbers<[1], [0], [0], [1], [0, 0, 1, 1], [], []>} : vector<1x128xf32>, vector<128x128xf32>, vector<1x128xf32> -> vector<1x128xf32>
    %cst_56 = arith.constant 0.001953125 : f32
    %95 = vector.broadcast %cst_56 : f32 to vector<1x128xf32>
    %96 = arith.mulf %94, %95 : vector<1x128xf32>
    %97 = arith.mulf %93, %93 : vector<1x128xf32>
    %98 = arith.subf %96, %97 : vector<1x128xf32>
    %cst_57 = arith.constant 1.000000e-03 : f32
    %99 = vector.broadcast %cst_57 : f32 to vector<1x128xf32>
    %100 = arith.addf %98, %99 : vector<1x128xf32>
    %101 = math.rsqrt %100 : vector<1x128xf32>
    %102 = arith.mulf %84, %101 : vector<1x128xf32>
    %103 = arith.mulf %102, %93 : vector<1x128xf32>
    %104 = arith.subf %85, %103 : vector<1x128xf32>
    %105 = vector.broadcast %102 : vector<1x128xf32> to vector<32x128xf32>
    %106 = arith.mulf %83, %105 : vector<32x128xf32>
    %107 = vector.broadcast %104 : vector<1x128xf32> to vector<32x128xf32>
    %108 = arith.addf %106, %107 : vector<32x128xf32>
    %109 = arith.addf %108, %0 : vector<32x128xf32>
    %cst_58 = arith.constant 0.000000e+00 : f32
    %110 = vector.broadcast %cst_58 : f32 to vector<32x128xf32>
    %111 = arith.maximumf %109, %110 : vector<32x128xf32>
    %c0_59 = arith.constant 0 : index
    %c0_60 = arith.constant 0 : index
    %112 = vector.load %arg9[%c0_59, %c0_60] : memref<32x128xf32, #tpu.memory_space<vmem>>, vector<32x128xf32>
    tpu.vector_store %arg9[%c0_59, %c0_60], %111 {strides = array<i32>} : memref<32x128xf32, #tpu.memory_space<vmem>>, vector<32x128xf32>,
    return
  }
  func.func @transform_0(%arg0: i32) -> (i32, i32) {
    %c0_i32 = arith.constant 0 : i32
    %c0_i32_0 = arith.constant 0 : i32
    %c0_i32_1 = arith.constant 0 : i32
    return %c0_i32, %c0_i32_0 : i32, i32
  }
  func.func @transform_1(%arg0: i32) -> (i32, i32, i32) {
    %c0_i32 = arith.constant 0 : i32
    %c0_i32_0 = arith.constant 0 : i32
    %c0_i32_1 = arith.constant 0 : i32
    %c0_i32_2 = arith.constant 0 : i32
    return %c0_i32, %c0_i32_0, %c0_i32_1 : i32, i32, i32
  }
  func.func @transform_2(%arg0: i32) -> (i32, i32) {
    %c0_i32 = arith.constant 0 : i32
    %c0_i32_0 = arith.constant 0 : i32
    %c0_i32_1 = arith.constant 0 : i32
    return %c0_i32, %c0_i32_0 : i32, i32
  }
  func.func @transform_3(%arg0: i32) -> (i32, i32) {
    %c0_i32 = arith.constant 0 : i32
    %c0_i32_0 = arith.constant 0 : i32
    %c0_i32_1 = arith.constant 0 : i32
    return %c0_i32, %c0_i32_0 : i32, i32
  }
  func.func @transform_4(%arg0: i32) -> (i32, i32, i32) {
    %c0_i32 = arith.constant 0 : i32
    %c0_i32_0 = arith.constant 0 : i32
    %c0_i32_1 = arith.constant 0 : i32
    %c0_i32_2 = arith.constant 0 : i32
    return %c0_i32, %c0_i32_0, %c0_i32_1 : i32, i32, i32
  }
  func.func @transform_5(%arg0: i32) -> (i32, i32) {
    %c0_i32 = arith.constant 0 : i32
    %c0_i32_0 = arith.constant 0 : i32
    %c0_i32_1 = arith.constant 0 : i32
    return %c0_i32, %c0_i32_0 : i32, i32
  }
  func.func @transform_6(%arg0: i32) -> (i32, i32) {
    %c0_i32 = arith.constant 0 : i32
    %c0_i32_0 = arith.constant 0 : i32
    %c0_i32_1 = arith.constant 0 : i32
    return %c0_i32, %c0_i32_0 : i32, i32
  }
  func.func @transform_7(%arg0: i32) -> (i32, i32) {
    %c0_i32 = arith.constant 0 : i32
    %c0_i32_0 = arith.constant 0 : i32
    %c0_i32_1 = arith.constant 0 : i32
    return %c0_i32, %c0_i32_0 : i32, i32
  }
  func.func @transform_8(%arg0: i32) -> (i32, i32) {
    %c0_i32 = arith.constant 0 : i32
    %c0_i32_0 = arith.constant 0 : i32
    %c0_i32_1 = arith.constant 0 : i32
    return %c0_i32, %c0_i32_0 : i32, i32
  }
}

</mosaic_0001>

<llo_original>
// kernel: tpu_custom_call.1
$region0: #{tpu_custom_call.1}
  #allocation0 [shape = 'u32[]', space=smem, size = 0x4, offset = 0x4, fixed_abs, tag = 'smem constant byte address 0x4 - core index']
  #allocation1 [shape = 'u32[72,128]{1,0:T(1,128)}', space=vmem, size = 0x9000, scoped, tag = 'internal scratch']
  %s0 = inlined_call_operand.hbm [shape: f32[32,128], index: 0, kind: input, shape index: {}]
  %s1 = inlined_call_operand.hbm [shape: f32[3,128,128], index: 1, kind: input, shape index: {}]
  %s2 = inlined_call_operand.vmem [shape: f32[1,128], index: 2, kind: input, shape index: {}]
  %s3 = inlined_call_operand.vmem [shape: f32[1,128], index: 3, kind: input, shape index: {}]
  %s4 = inlined_call_operand.hbm [shape: f32[3,128,128], index: 4, kind: input, shape index: {}]
  %s5 = inlined_call_operand.vmem [shape: f32[1,128], index: 5, kind: input, shape index: {}]
  %s6 = inlined_call_operand.vmem [shape: f32[1,128], index: 6, kind: input, shape index: {}]
  %s7 = inlined_call_operand.hbm [shape: f32[128,128], index: 7, kind: input, shape index: {}]
  %s8 = inlined_call_operand.hbm [shape: f32[32,128], index: 8, kind: output, shape index: {}]
  %s9 = sld [smem:[#allocation0]]
  $region58: #{tpu_custom_call.1} parent=0
    _
  %s11 = ssub.s32 1, %s9
  %s12 = scalar_select 0, %s11, %s9
  $region1: #{tpu_custom_call.1} parent=0
    #allocation2 [shape = 'u8[16384]{0}', space=vmem, size = 0x4000, scoped, tag = 'input window, operand 0, single buffered']
    #allocation3 [shape = 's32[1]{0}', space=sflag, size = 0x4, scoped, tag = 'scoped memory for tpu_custom_call.1']
    #allocation4 [shape = 's32[1]{0}', space=sflag, size = 0x4, scoped, tag = 'scoped memory for tpu_custom_call.1']
    #allocation5 [shape = 'u8[196608]{0}', space=vmem, size = 0x30000, scoped, tag = 'input window, operand 1, single buffered']
    #allocation6 [shape = 's32[1]{0}', space=sflag, size = 0x4, scoped, tag = 'scoped memory for tpu_custom_call.1']
    #allocation7 [shape = 'u8[196608]{0}', space=vmem, size = 0x30000, scoped, tag = 'input window, operand 4, single buffered']
    #allocation8 [shape = 'u8[65536]{0}', space=vmem, size = 0x10000, scoped, tag = 'input window, operand 7, single buffered']
    #allocation9 [shape = 's32[1]{0}', space=sflag, size = 0x4, scoped, tag = 'scoped memory for tpu_custom_call.1']
    #allocation10 [shape = 'u8[16384]{0}', space=vmem, size = 0x4000, scoped, tag = 'output window, operand 0, single buffered']
    %13 = vsyncpa [#allocation3], 0
    %14 = vsyncpa [#allocation6], 0
    %15 = vsyncpa [#allocation9], 0
    %16 = vsyncpa [#allocation4], 0
    // Predicated region
    $region2: #{tpu_custom_call.1} parent=1 // pred_check
      _
    $region3: #{tpu_custom_call.1} parent=1 // pred_check_branch
      %18 = sbr.rel (0) target = $region5
    $region4: #{tpu_custom_call.1} parent=1 // pred_region
      %20 = vsyncadd [#allocation3], 0
      %s21 = sshll.u32 %s0, 4
      %s22 = int_to_ptr.hbm [resolvable:$true] %s21
      %s23 = sshll.u32 [#allocation2], 4
      %s24 = int_to_ptr.vmem [resolvable:$true] %s23
      %29 = dma.hbm_to_vmem [thread:$0]  %s22, 512, %s24, [#allocation3], 128, 128, 8
    $region5: #{tpu_custom_call.1} parent=1 // pred_fallthru
      _
    // Predicated region
    $region6: #{tpu_custom_call.1} parent=1 // pred_check
      _
    $region7: #{tpu_custom_call.1} parent=1 // pred_check_branch
      %31 = sbr.rel (0) target = $region9
    $region8: #{tpu_custom_call.1} parent=1 // pred_region
      %33 = vsyncadd [#allocation6], 0
      %s34 = sshll.u32 %s1, 4
      %s35 = int_to_ptr.hbm [resolvable:$true] %s34
      %s36 = sshll.u32 [#allocation5], 4
      %s37 = int_to_ptr.vmem [resolvable:$true] %s36
      %42 = dma.hbm_to_vmem [thread:$0]  %s35, 6144, %s37, [#allocation6], 128, 128, 8
    $region9: #{tpu_custom_call.1} parent=1 // pred_fallthru
      _
    // Predicated region
    $region10: #{tpu_custom_call.1} parent=1 // pred_check
      _
    $region11: #{tpu_custom_call.1} parent=1 // pred_check_branch
      %44 = sbr.rel (0) target = $region13
    $region12: #{tpu_custom_call.1} parent=1 // pred_region
      _
    $region13: #{tpu_custom_call.1} parent=1 // pred_fallthru
      _
    // Predicated region
    $region14: #{tpu_custom_call.1} parent=1 // pred_check
      _
    $region15: #{tpu_custom_call.1} parent=1 // pred_check_branch
      %46 = sbr.rel (0) target = $region17
    $region16: #{tpu_custom_call.1} parent=1 // pred_region
      _
    $region17: #{tpu_custom_call.1} parent=1 // pred_fallthru
      _
    // Predicated region
    $region18: #{tpu_custom_call.1} parent=1 // pred_check
      _
    $region19: #{tpu_custom_call.1} parent=1 // pred_check_branch
      %48 = sbr.rel (0) target = $region21
    $region20: #{tpu_custom_call.1} parent=1 // pred_region
      %50 = vsyncadd [#allocation6], 0
      %s51 = sshll.u32 %s4, 4
      %s52 = int_to_ptr.hbm [resolvable:$true] %s51
      %s53 = sshll.u32 [#allocation7], 4
      %s54 = int_to_ptr.vmem [resolvable:$true] %s53
      %59 = dma.hbm_to_vmem [thread:$0]  %s52, 6144, %s54, [#allocation6], 128, 128, 8
    $region21: #{tpu_custom_call.1} parent=1 // pred_fallthru
      _
    // Predicated region
    $region22: #{tpu_custom_call.1} parent=1 // pred_check
      _
    $region23: #{tpu_custom_call.1} parent=1 // pred_check_branch
      %61 = sbr.rel (0) target = $region25
    $region24: #{tpu_custom_call.1} parent=1 // pred_region
      _
    $region25: #{tpu_custom_call.1} parent=1 // pred_fallthru
      _
    // Predicated region
    $region26: #{tpu_custom_call.1} parent=1 // pred_check
      _
    $region27: #{tpu_custom_call.1} parent=1 // pred_check_branch
      %63 = sbr.rel (0) target = $region29
    $region28: #{tpu_custom_call.1} parent=1 // pred_region
      _
    $region29: #{tpu_custom_call.1} parent=1 // pred_fallthru
      _
    // Predicated region
    $region30: #{tpu_custom_call.1} parent=1 // pred_check
      _
    $region31: #{tpu_custom_call.1} parent=1 // pred_check_branch
      %65 = sbr.rel (0) target = $region33
    $region32: #{tpu_custom_call.1} parent=1 // pred_region
      %67 = vsyncadd [#allocation9], 0
      %s68 = sshll.u32 %s7, 4
      %s69 = int_to_ptr.hbm [resolvable:$true] %s68
      %s70 = sshll.u32 [#allocation8], 4
      %s71 = int_to_ptr.vmem [resolvable:$true] %s70
      %76 = dma.hbm_to_vmem [thread:$0]  %s69, 2048, %s71, [#allocation9], 128, 128, 8
    $region33: #{tpu_custom_call.1} parent=1 // pred_fallthru
      _
    // Predicated region
    $region34: #{tpu_custom_call.1} parent=1 // pred_check
      _
    $region35: #{tpu_custom_call.1} parent=1 // pred_check_branch
      %78 = sbr.rel (0) target = $region37
    $region36: #{tpu_custom_call.1} parent=1 // pred_region
      %80 = dma.done [#allocation3], 512
    $region37: #{tpu_custom_call.1} parent=1 // pred_fallthru
      _
    // Predicated region
    $region38: #{tpu_custom_call.1} parent=1 // pred_check
      _
    $region39: #{tpu_custom_call.1} parent=1 // pred_check_branch
      %82 = sbr.rel (0) target = $region41
    $region40: #{tpu_custom_call.1} parent=1 // pred_region
      %84 = dma.done [#allocation6], 6144
    $region41: #{tpu_custom_call.1} parent=1 // pred_fallthru
      _
    // Predicated region
    $region42: #{tpu_custom_call.1} parent=1 // pred_check
      _
    $region43: #{tpu_custom_call.1} parent=1 // pred_check_branch
      %86 = sbr.rel (0) target = $region45
    $region44: #{tpu_custom_call.1} parent=1 // pred_region
      %88 = dma.done [#allocation6], 6144
    $region45: #{tpu_custom_call.1} parent=1 // pred_fallthru
      _
    // Predicated region
    $region46: #{tpu_custom_call.1} parent=1 // pred_check
      _
    $region47: #{tpu_custom_call.1} parent=1 // pred_check_branch
      %90 = sbr.rel (0) target = $region49
    $region48: #{tpu_custom_call.1} parent=1 // pred_region
      %92 = dma.done [#allocation9], 2048
    $region49: #{tpu_custom_call.1} parent=1 // pred_fallthru
      _
    %v93 = vld [vmem:[#allocation2] sm:$0xff]
    %v94 = vld [vmem:[#allocation2 + $0x8] sm:$0xff]
    %v95 = vld [vmem:[#allocation2 + $0x10] sm:$0xff]
    %v96 = vld [vmem:[#allocation2 + $0x18] sm:$0xff]
    %v97 = vld [vmem:[#allocation8] sm:$0xff]
    %v98 = vld [vmem:[#allocation8 + $0x8] sm:$0xff]
    %v99 = vld [vmem:[#allocation8 + $0x10] sm:$0xff]
    %v100 = vld [vmem:[#allocation8 + $0x18] sm:$0xff]
    %v101 = vld [vmem:[#allocation8 + $0x20] sm:$0xff]
    %v102 = vld [vmem:[#allocation8 + $0x28] sm:$0xff]
    %v103 = vld [vmem:[#allocation8 + $0x30] sm:$0xff]
    %v104 = vld [vmem:[#allocation8 + $0x38] sm:$0xff]
    %v105 = vld [vmem:[#allocation8 + $0x40] sm:$0xff]
    %v106 = vld [vmem:[#allocation8 + $0x48] sm:$0xff]
    %v107 = vld [vmem:[#allocation8 + $0x50] sm:$0xff]
    %v108 = vld [vmem:[#allocation8 + $0x58] sm:$0xff]
    %v109 = vld [vmem:[#allocation8 + $0x60] sm:$0xff]
    %v110 = vld [vmem:[#allocation8 + $0x68] sm:$0xff]
    %v111 = vld [vmem:[#allocation8 + $0x70] sm:$0xff]
    %v112 = vld [vmem:[#allocation8 + $0x78] sm:$0xff]
    %v113 = vlaneseq
    %v114 = vshrl.u32 %v113, 7
    %v115 = vadd.s32 %v114, 8
    %v116 = vadd.s32 %v114, 16
    %v117 = vadd.s32 %v114, 24
    %vm118 = vcmp.lt.s32.totalorder %v114, 0
    %v119 = vsub.s32 0, %v114
    %v120 = vsel %vm118, %v119, %v114
    %v121 = vshrl.u32 %v120, 4
    %v122 = vand.u32 %v120, 15
    %v123 = vsub.s32 0, %v122
    %v124 = vsel %vm118, %v123, %v122
    %vm125 = vcmp.lt.s32.totalorder %v115, 0
    %v126 = vsub.s32 0, %v115
    %v127 = vsel %vm125, %v126, %v115
    %v128 = vshrl.u32 %v127, 4
    %v129 = vand.u32 %v127, 15
    %v130 = vsub.s32 0, %v129
    %v131 = vsel %vm125, %v130, %v129
    %vm132 = vcmp.lt.s32.totalorder %v116, 0
    %v133 = vsub.s32 0, %v116
    %v134 = vsel %vm132, %v133, %v116
    %v135 = vshrl.u32 %v134, 4
    %v136 = vand.u32 %v134, 15
    %v137 = vsub.s32 0, %v136
    %v138 = vsel %vm132, %v137, %v136
    %vm139 = vcmp.lt.s32.totalorder %v117, 0
    %v140 = vsub.s32 0, %v117
    %v141 = vsel %vm139, %v140, %v117
    %v142 = vshrl.u32 %v141, 4
    %v143 = vand.u32 %v141, 15
    %v144 = vsub.s32 0, %v143
    %v145 = vsel %vm139, %v144, %v143
    %vm146 = vcmp.ne.s32.totalorder %v124, 0
    %vm147 = vcmp.ne.s32.totalorder %v131, 0
    %vm148 = vcmp.ne.s32.totalorder %v138, 0
    %vm149 = vcmp.ne.s32.totalorder %v145, 0
    %vm150 = vcmp.lt.s32.totalorder %v124, 0
    %vm151 = vcmp.lt.s32.totalorder %v131, 0
    %vm152 = vcmp.lt.s32.totalorder %v138, 0
    %vm153 = vcmp.lt.s32.totalorder %v145, 0
    %vm154 = vmand %vm150, %vm146
    %vm155 = vmand %vm151, %vm147
    %vm156 = vmand %vm152, %vm148
    %vm157 = vmand %vm153, %vm149
    %v158 = vadd.s32 %v124, 16
    %v159 = vadd.s32 %v131, 16
    %v160 = vadd.s32 %v138, 16
    %v161 = vadd.s32 %v145, 16
    %v162 = vsel %vm154, %v158, %v124
    %v163 = vsel %vm155, %v159, %v131
    %v164 = vsel %vm156, %v160, %v138
    %v165 = vsel %vm157, %v161, %v145
    %vm166 = vcmp.ne.s32.totalorder %v162, 0
    %vm167 = vcmp.ne.s32.totalorder %v163, 0
    %vm168 = vcmp.ne.s32.totalorder %v164, 0
    %vm169 = vcmp.ne.s32.totalorder %v165, 0
    %vm170 = vcmp.ne.s32.totalorder %v162, 15
    %vm171 = vcmp.ne.s32.totalorder %v163, 15
    %vm172 = vcmp.ne.s32.totalorder %v164, 15
    %vm173 = vcmp.ne.s32.totalorder %v165, 15
    %s174 = scalar_lea.vmem [#allocation5], 128
    %v175 = vld [vmem:[%s174] sm:$0xff]
    %v176 = vld [vmem:[%s174 + $0x8] sm:$0xff]
    %v177 = vld [vmem:[%s174 + $0x10] sm:$0xff]
    %v178 = vld [vmem:[%s174 + $0x18] sm:$0xff]
    %v179 = vld [vmem:[%s174 + $0x20] sm:$0xff]
    %v180 = vld [vmem:[%s174 + $0x28] sm:$0xff]
    %v181 = vld [vmem:[%s174 + $0x30] sm:$0xff]
    %v182 = vld [vmem:[%s174 + $0x38] sm:$0xff]
    %v183 = vld [vmem:[%s174 + $0x40] sm:$0xff]
    %v184 = vld [vmem:[%s174 + $0x48] sm:$0xff]
    %v185 = vld [vmem:[%s174 + $0x50] sm:$0xff]
    %v186 = vld [vmem:[%s174 + $0x58] sm:$0xff]
    %v187 = vld [vmem:[%s174 + $0x60] sm:$0xff]
    %v188 = vld [vmem:[%s174 + $0x68] sm:$0xff]
    %v189 = vld [vmem:[%s174 + $0x70] sm:$0xff]
    %v190 = vld [vmem:[%s174 + $0x78] sm:$0xff]
    %v191 = vrot.slane %v93, 7
    %v192 = vrot.slane %v94, 7
    %v193 = vrot.slane %v95, 7
    %v194 = vrot.slane %v96, 7
    %vm195 = vcmp.lt.s32.totalorder %v114, 1
    %v196 = vsel %vm195, %v193, %v194
    %v197 = vsel %vm195, %v192, %v193
    %v198 = vsel %vm195, %v191, %v192
    %v199 = vsel %vm195, %v194, %v191
    %v200 = vsel %vm166, %v199, 0.0
    %v201 = vsel %vm167, %v198, 0.0
    %v202 = vsel %vm168, %v197, 0.0
    %v203 = vsel %vm169, %v196, 0.0
    %v204 = vld [vmem:[#allocation5] sm:$0xff]
    %v205 = vld [vmem:[#allocation5 + $0x8] sm:$0xff]
    %v206 = vld [vmem:[#allocation5 + $0x10] sm:$0xff]
    %v207 = vld [vmem:[#allocation5 + $0x18] sm:$0xff]
    %v208 = vld [vmem:[#allocation5 + $0x20] sm:$0xff]
    %v209 = vld [vmem:[#allocation5 + $0x28] sm:$0xff]
    %v210 = vld [vmem:[#allocation5 + $0x30] sm:$0xff]
    %v211 = vld [vmem:[#allocation5 + $0x38] sm:$0xff]
    %v212 = vld [vmem:[#allocation5 + $0x40] sm:$0xff]
    %v213 = vld [vmem:[#allocation5 + $0x48] sm:$0xff]
    %v214 = vld [vmem:[#allocation5 + $0x50] sm:$0xff]
    %v215 = vld [vmem:[#allocation5 + $0x58] sm:$0xff]
    %v216 = vld [vmem:[#allocation5 + $0x60] sm:$0xff]
    %v217 = vld [vmem:[#allocation5 + $0x68] sm:$0xff]
    %v218 = vld [vmem:[#allocation5 + $0x70] sm:$0xff]
    %v219 = vld [vmem:[#allocation5 + $0x78] sm:$0xff]
    %220 = vmatpush.msra.mxu0 %v219
    %221 = vmatpush.msra.mxu0 %v218
    %222 = vmatpush.msra.mxu0 %v217
    %223 = vmatpush.msra.mxu0 %v216
    %224 = vmatpush.msra.mxu0 %v215
    %225 = vmatpush.msra.mxu0 %v214
    %226 = vmatpush.msra.mxu0 %v213
    %227 = vmatpush.msra.mxu0 %v212
    %228 = vmatpush.msra.mxu0 %v211
    %229 = vmatpush.msra.mxu0 %v210
    %230 = vmatpush.msra.mxu0 %v209
    %231 = vmatpush.msra.mxu0 %v208
    %232 = vmatpush.msra.mxu0 %v207
    %233 = vmatpush.msra.mxu0 %v206
    %234 = vmatpush.msra.mxu0 %v205
    %235 = vmatpush.msra.mxu0 %v204
    %236 = vmatmul.f32.gmra.mxu0 %v200
    %v237 = vpop.f32.mrf.mxu0
    %v238 = vadd.f32 0.0, %v237
    %239 = vmatmul.f32.gmra.mxu0 %v201
    %v240 = vpop.f32.mrf.mxu0
    %v241 = vadd.f32 0.0, %v240
    %242 = vmatmul.f32.gmra.mxu0 %v202
    %v243 = vpop.f32.mrf.mxu0
    %v244 = vadd.f32 0.0, %v243
    %245 = vmatmul.f32.gmra.mxu0 %v203
    %v246 = vpop.f32.mrf.mxu0
    %v247 = vadd.f32 0.0, %v246
    %248 = vdwg.mxu0
    %249 = vmatpush.msra.mxu0 %v190
    %250 = vmatpush.msra.mxu0 %v189
    %251 = vmatpush.msra.mxu0 %v188
    %252 = vmatpush.msra.mxu0 %v187
    %253 = vmatpush.msra.mxu0 %v186
    %254 = vmatpush.msra.mxu0 %v185
    %255 = vmatpush.msra.mxu0 %v184
    %256 = vmatpush.msra.mxu0 %v183
    %257 = vmatpush.msra.mxu0 %v182
    %258 = vmatpush.msra.mxu0 %v181
    %259 = vmatpush.msra.mxu0 %v180
    %260 = vmatpush.msra.mxu0 %v179
    %261 = vmatpush.msra.mxu0 %v178
    %262 = vmatpush.msra.mxu0 %v177
    %263 = vmatpush.msra.mxu0 %v176
    %264 = vmatpush.msra.mxu0 %v175
    %265 = vmatmul.f32.gmra.mxu0 %v93
    %v266 = vpop.f32.mrf.mxu0
    %v267 = vadd.f32 %v238, %v266
    %268 = vmatmul.f32.gmra.mxu0 %v94
    %v269 = vpop.f32.mrf.mxu0
    %v270 = vadd.f32 %v241, %v269
    %271 = vmatmul.f32.gmra.mxu0 %v95
    %v272 = vpop.f32.mrf.mxu0
    %v273 = vadd.f32 %v244, %v272
    %274 = vmatmul.f32.gmra.mxu0 %v96
    %v275 = vpop.f32.mrf.mxu0
    %v276 = vadd.f32 %v247, %v275
    %277 = vdwg.mxu0
    %v278 = vrot.slane %v93, 1
    %v279 = vrot.slane %v94, 1
    %v280 = vrot.slane %v95, 1
    %v281 = vrot.slane %v96, 1
    %vm282 = vcmp.lt.s32.totalorder %v114, 7
    %v283 = vsel %vm282, %v280, %v281
    %v284 = vsel %vm282, %v279, %v280
    %v285 = vsel %vm282, %v278, %v279
    %v286 = vsel %vm282, %v281, %v278
    %v287 = vsel %vm170, %v285, 0.0
    %v288 = vsel %vm171, %v284, 0.0
    %v289 = vsel %vm172, %v283, 0.0
    %v290 = vsel %vm173, %v286, 0.0
    %s291 = scalar_lea.vmem [#allocation5], 256
    %v292 = vld [vmem:[%s291] sm:$0xff]
    %v293 = vld [vmem:[%s291 + $0x8] sm:$0xff]
    %v294 = vld [vmem:[%s291 + $0x10] sm:$0xff]
    %v295 = vld [vmem:[%s291 + $0x18] sm:$0xff]
    %v296 = vld [vmem:[%s291 + $0x20] sm:$0xff]
    %v297 = vld [vmem:[%s291 + $0x28] sm:$0xff]
    %v298 = vld [vmem:[%s291 + $0x30] sm:$0xff]
    %v299 = vld [vmem:[%s291 + $0x38] sm:$0xff]
    %v300 = vld [vmem:[%s291 + $0x40] sm:$0xff]
    %v301 = vld [vmem:[%s291 + $0x48] sm:$0xff]
    %v302 = vld [vmem:[%s291 + $0x50] sm:$0xff]
    %v303 = vld [vmem:[%s291 + $0x58] sm:$0xff]
    %v304 = vld [vmem:[%s291 + $0x60] sm:$0xff]
    %v305 = vld [vmem:[%s291 + $0x68] sm:$0xff]
    %v306 = vld [vmem:[%s291 + $0x70] sm:$0xff]
    %v307 = vld [vmem:[%s291 + $0x78] sm:$0xff]
    %308 = vmatpush.msra.mxu0 %v307
    %309 = vmatpush.msra.mxu0 %v306
    %310 = vmatpush.msra.mxu0 %v305
    %311 = vmatpush.msra.mxu0 %v304
    %312 = vmatpush.msra.mxu0 %v303
    %313 = vmatpush.msra.mxu0 %v302
    %314 = vmatpush.msra.mxu0 %v301
    %315 = vmatpush.msra.mxu0 %v300
    %316 = vmatpush.msra.mxu0 %v299
    %317 = vmatpush.msra.mxu0 %v298
    %318 = vmatpush.msra.mxu0 %v297
    %319 = vmatpush.msra.mxu0 %v296
    %320 = vmatpush.msra.mxu0 %v295
    %321 = vmatpush.msra.mxu0 %v294
    %322 = vmatpush.msra.mxu0 %v293
    %323 = vmatpush.msra.mxu0 %v292
    %324 = vmatmul.f32.gmra.mxu0 %v287
    %v325 = vpop.f32.mrf.mxu0
    %v326 = vadd.f32 0.0, %v325
    %327 = vmatmul.f32.gmra.mxu0 %v288
    %v328 = vpop.f32.mrf.mxu0
    %v329 = vadd.f32 0.0, %v328
    %330 = vmatmul.f32.gmra.mxu0 %v289
    %v331 = vpop.f32.mrf.mxu0
    %v332 = vadd.f32 0.0, %v331
    %333 = vmatmul.f32.gmra.mxu0 %v290
    %v334 = vpop.f32.mrf.mxu0
    %v335 = vadd.f32 0.0, %v334
    %336 = vdwg.mxu0
    %v337 = vadd.f32 %v267, %v326
    %v338 = vadd.f32 %v270, %v329
    %v339 = vadd.f32 %v273, %v332
    %v340 = vadd.f32 %v276, %v335
    %v341 = vld [vmem:[%s2] sm:$0x1]
    %v342 = vld [vmem:[%s3] sm:$0x1]
    %v343 = vadd.f32 %v337, %v338
    %v344 = vadd.f32 %v343, %v339
    %v345 = vadd.f32 %v344, %v340
    %v346 = vrot.slane %v345, 4
    %v347 = vadd.f32 %v345, %v346
    %v348 = vrot.slane %v347, 2
    %v349 = vadd.f32 %v347, %v348
    %v350 = vrot.slane %v349, 1
    %v351 = vadd.f32 %v349, %v350
    %v352 = vmul.f32 %v337, %v337
    %v353 = vmul.f32 %v338, %v338
    %v354 = vmul.f32 %v339, %v339
    %v355 = vmul.f32 %v340, %v340
    %v356 = vadd.f32 %v352, %v353
    %v357 = vadd.f32 %v356, %v354
    %v358 = vadd.f32 %v357, %v355
    %v359 = vrot.slane %v358, 4
    %v360 = vadd.f32 %v358, %v359
    %v361 = vrot.slane %v360, 2
    %v362 = vadd.f32 %v360, %v361
    %v363 = vrot.slane %v362, 1
    %v364 = vadd.f32 %v362, %v363
    %365 = vmatpush.msra.mxu0 %v112
    %366 = vmatpush.msra.mxu0 %v111
    %367 = vmatpush.msra.mxu0 %v110
    %368 = vmatpush.msra.mxu0 %v109
    %369 = vmatpush.msra.mxu0 %v108
    %370 = vmatpush.msra.mxu0 %v107
    %371 = vmatpush.msra.mxu0 %v106
    %372 = vmatpush.msra.mxu0 %v105
    %373 = vmatpush.msra.mxu0 %v104
    %374 = vmatpush.msra.mxu0 %v103
    %375 = vmatpush.msra.mxu0 %v102
    %376 = vmatpush.msra.mxu0 %v101
    %377 = vmatpush.msra.mxu0 %v100
    %378 = vmatpush.msra.mxu0 %v99
    %379 = vmatpush.msra.mxu0 %v98
    %380 = vmatpush.msra.mxu0 %v97
    %381 = vmatmul.f32.gmra.mxu0 %v351
    %v382 = vpop.f32.mrf.mxu0
    %v383 = vadd.f32 0.0, %v382
    %384 = vdwg.mxu0
    %v385 = vmul.f32 %v383, 0.001953125
    %386 = vmatpush.msra.mxu0 %v112
    %387 = vmatpush.msra.mxu0 %v111
    %388 = vmatpush.msra.mxu0 %v110
    %389 = vmatpush.msra.mxu0 %v109
    %390 = vmatpush.msra.mxu0 %v108
    %391 = vmatpush.msra.mxu0 %v107
    %392 = vmatpush.msra.mxu0 %v106
    %393 = vmatpush.msra.mxu0 %v105
    %394 = vmatpush.msra.mxu0 %v104
    %395 = vmatpush.msra.mxu0 %v103
    %396 = vmatpush.msra.mxu0 %v102
    %397 = vmatpush.msra.mxu0 %v101
    %398 = vmatpush.msra.mxu0 %v100
    %399 = vmatpush.msra.mxu0 %v99
    %400 = vmatpush.msra.mxu0 %v98
    %401 = vmatpush.msra.mxu0 %v97
    %402 = vmatmul.f32.gmra.mxu0 %v364
    %v403 = vpop.f32.mrf.mxu0
    %v404 = vadd.f32 0.0, %v403
    %405 = vdwg.mxu0
    %v406 = vmul.f32 %v404, 0.001953125
    %v407 = vmul.f32 %v385, %v385
    %v408 = vsub.f32 %v406, %v407
    %v409 = vadd.f32 %v408, 0.001
    %v410 = vrsqrt.pop %v409
    %v411 = vmul.f32 %v410, %v409
    %v412 = vmul.f32 %v411, %v410
    %v413 = vmul.f32 0.5, %v412
    %v414 = vsub.f32 1.5, %v413
    %v415 = vmul.f32 %v410, %v414
    %vm416 = vweird.f32 %v409
    %vm417 = vweird.f32 %v410
    %vm418 = vmor %vm416, %vm417
    %v419 = vsel %vm418, %v410, %v415
    %v420 = vmul.f32 %v341, %v419
    %v421 = vmul.f32 %v420, %v385
    %v422 = vsub.f32 %v342, %v421
    %v424 = vperm.slane %v420, 0
    %v426 = vmul.f32 %v337, %v424
    %v427 = vmul.f32 %v338, %v424
    %v428 = vmul.f32 %v339, %v424
    %v429 = vmul.f32 %v340, %v424
    %v431 = vperm.slane %v422, 0
    %v433 = vadd.f32 %v426, %v431
    %v434 = vadd.f32 %v427, %v431
    %v435 = vadd.f32 %v428, %v431
    %v436 = vadd.f32 %v429, %v431
    %v437 = vmax.f32 %v433, 0.0
    %v438 = vmax.f32 %v434, 0.0
    %v439 = vmax.f32 %v435, 0.0
    %v440 = vmax.f32 %v436, 0.0
    %s441 = scalar_lea.vmem [#allocation7], 128
    %v442 = vld [vmem:[%s441] sm:$0xff]
    %v443 = vld [vmem:[%s441 + $0x8] sm:$0xff]
    %v444 = vld [vmem:[%s441 + $0x10] sm:$0xff]
    %v445 = vld [vmem:[%s441 + $0x18] sm:$0xff]
    %v446 = vld [vmem:[%s441 + $0x20] sm:$0xff]
    %v447 = vld [vmem:[%s441 + $0x28] sm:$0xff]
    %v448 = vld [vmem:[%s441 + $0x30] sm:$0xff]
    %v449 = vld [vmem:[%s441 + $0x38] sm:$0xff]
    %v450 = vld [vmem:[%s441 + $0x40] sm:$0xff]
    %v451 = vld [vmem:[%s441 + $0x48] sm:$0xff]
    %v452 = vld [vmem:[%s441 + $0x50] sm:$0xff]
    %v453 = vld [vmem:[%s441 + $0x58] sm:$0xff]
    %v454 = vld [vmem:[%s441 + $0x60] sm:$0xff]
    %v455 = vld [vmem:[%s441 + $0x68] sm:$0xff]
    %v456 = vld [vmem:[%s441 + $0x70] sm:$0xff]
    %v457 = vld [vmem:[%s441 + $0x78] sm:$0xff]
    %v458 = vrot.slane %v437, 7
    %v459 = vrot.slane %v438, 7
    %v460 = vrot.slane %v439, 7
    %v461 = vrot.slane %v440, 7
    %v462 = vsel %vm195, %v460, %v461
    %v463 = vsel %vm195, %v459, %v460
    %v464 = vsel %vm195, %v458, %v459
    %v465 = vsel %vm195, %v461, %v458
    %v466 = vsel %vm166, %v465, 0.0
    %v467 = vsel %vm167, %v464, 0.0
    %v468 = vsel %vm168, %v463, 0.0
    %v469 = vsel %vm169, %v462, 0.0
    %v470 = vld [vmem:[#allocation7] sm:$0xff]
    %v471 = vld [vmem:[#allocation7 + $0x8] sm:$0xff]
    %v472 = vld [vmem:[#allocation7 + $0x10] sm:$0xff]
    %v473 = vld [vmem:[#allocation7 + $0x18] sm:$0xff]
    %v474 = vld [vmem:[#allocation7 + $0x20] sm:$0xff]
    %v475 = vld [vmem:[#allocation7 + $0x28] sm:$0xff]
    %v476 = vld [vmem:[#allocation7 + $0x30] sm:$0xff]
    %v477 = vld [vmem:[#allocation7 + $0x38] sm:$0xff]
    %v478 = vld [vmem:[#allocation7 + $0x40] sm:$0xff]
    %v479 = vld [vmem:[#allocation7 + $0x48] sm:$0xff]
    %v480 = vld [vmem:[#allocation7 + $0x50] sm:$0xff]
    %v481 = vld [vmem:[#allocation7 + $0x58] sm:$0xff]
    %v482 = vld [vmem:[#allocation7 + $0x60] sm:$0xff]
    %v483 = vld [vmem:[#allocation7 + $0x68] sm:$0xff]
    %v484 = vld [vmem:[#allocation7 + $0x70] sm:$0xff]
    %v485 = vld [vmem:[#allocation7 + $0x78] sm:$0xff]
    %486 = vmatpush.msra.mxu0 %v485
    %487 = vmatpush.msra.mxu0 %v484
    %488 = vmatpush.msra.mxu0 %v483
    %489 = vmatpush.msra.mxu0 %v482
    %490 = vmatpush.msra.mxu0 %v481
    %491 = vmatpush.msra.mxu0 %v480
    %492 = vmatpush.msra.mxu0 %v479
    %493 = vmatpush.msra.mxu0 %v478
    %494 = vmatpush.msra.mxu0 %v477
    %495 = vmatpush.msra.mxu0 %v476
    %496 = vmatpush.msra.mxu0 %v475
    %497 = vmatpush.msra.mxu0 %v474
    %498 = vmatpush.msra.mxu0 %v473
    %499 = vmatpush.msra.mxu0 %v472
    %500 = vmatpush.msra.mxu0 %v471
    %501 = vmatpush.msra.mxu0 %v470
    %502 = vmatmul.f32.gmra.mxu0 %v466
    %v503 = vpop.f32.mrf.mxu0
    %v504 = vadd.f32 0.0, %v503
    %505 = vmatmul.f32.gmra.mxu0 %v467
    %v506 = vpop.f32.mrf.mxu0
    %v507 = vadd.f32 0.0, %v506
    %508 = vmatmul.f32.gmra.mxu0 %v468
    %v509 = vpop.f32.mrf.mxu0
    %v510 = vadd.f32 0.0, %v509
    %511 = vmatmul.f32.gmra.mxu0 %v469
    %v512 = vpop.f32.mrf.mxu0
    %v513 = vadd.f32 0.0, %v512
    %514 = vdwg.mxu0
    %515 = vmatpush.msra.mxu0 %v457
    %516 = vmatpush.msra.mxu0 %v456
    %517 = vmatpush.msra.mxu0 %v455
    %518 = vmatpush.msra.mxu0 %v454
    %519 = vmatpush.msra.mxu0 %v453
    %520 = vmatpush.msra.mxu0 %v452
    %521 = vmatpush.msra.mxu0 %v451
    %522 = vmatpush.msra.mxu0 %v450
    %523 = vmatpush.msra.mxu0 %v449
    %524 = vmatpush.msra.mxu0 %v448
    %525 = vmatpush.msra.mxu0 %v447
    %526 = vmatpush.msra.mxu0 %v446
    %527 = vmatpush.msra.mxu0 %v445
    %528 = vmatpush.msra.mxu0 %v444
    %529 = vmatpush.msra.mxu0 %v443
    %530 = vmatpush.msra.mxu0 %v442
    %531 = vmatmul.f32.gmra.mxu0 %v437
    %v532 = vpop.f32.mrf.mxu0
    %v533 = vadd.f32 %v504, %v532
    %534 = vmatmul.f32.gmra.mxu0 %v438
    %v535 = vpop.f32.mrf.mxu0
    %v536 = vadd.f32 %v507, %v535
    %537 = vmatmul.f32.gmra.mxu0 %v439
    %v538 = vpop.f32.mrf.mxu0
    %v539 = vadd.f32 %v510, %v538
    %540 = vmatmul.f32.gmra.mxu0 %v440
    %v541 = vpop.f32.mrf.mxu0
    %v542 = vadd.f32 %v513, %v541
    %543 = vdwg.mxu0
    %v544 = vrot.slane %v437, 1
    %v545 = vrot.slane %v438, 1
    %v546 = vrot.slane %v439, 1
    %v547 = vrot.slane %v440, 1
    %v548 = vsel %vm282, %v546, %v547
    %v549 = vsel %vm282, %v545, %v546
    %v550 = vsel %vm282, %v544, %v545
    %v551 = vsel %vm282, %v547, %v544
    %v552 = vsel %vm170, %v550, 0.0
    %v553 = vsel %vm171, %v549, 0.0
    %v554 = vsel %vm172, %v548, 0.0
    %v555 = vsel %vm173, %v551, 0.0
    %s556 = scalar_lea.vmem [#allocation7], 256
    %v557 = vld [vmem:[%s556] sm:$0xff]
    %v558 = vld [vmem:[%s556 + $0x8] sm:$0xff]
    %v559 = vld [vmem:[%s556 + $0x10] sm:$0xff]
    %v560 = vld [vmem:[%s556 + $0x18] sm:$0xff]
    %v561 = vld [vmem:[%s556 + $0x20] sm:$0xff]
    %v562 = vld [vmem:[%s556 + $0x28] sm:$0xff]
    %v563 = vld [vmem:[%s556 + $0x30] sm:$0xff]
    %v564 = vld [vmem:[%s556 + $0x38] sm:$0xff]
    %v565 = vld [vmem:[%s556 + $0x40] sm:$0xff]
    %v566 = vld [vmem:[%s556 + $0x48] sm:$0xff]
    %v567 = vld [vmem:[%s556 + $0x50] sm:$0xff]
    %v568 = vld [vmem:[%s556 + $0x58] sm:$0xff]
    %v569 = vld [vmem:[%s556 + $0x60] sm:$0xff]
    %v570 = vld [vmem:[%s556 + $0x68] sm:$0xff]
    %v571 = vld [vmem:[%s556 + $0x70] sm:$0xff]
    %v572 = vld [vmem:[%s556 + $0x78] sm:$0xff]
    %573 = vmatpush.msra.mxu0 %v572
    %574 = vmatpush.msra.mxu0 %v571
    %575 = vmatpush.msra.mxu0 %v570
    %576 = vmatpush.msra.mxu0 %v569
    %577 = vmatpush.msra.mxu0 %v568
    %578 = vmatpush.msra.mxu0 %v567
    %579 = vmatpush.msra.mxu0 %v566
    %580 = vmatpush.msra.mxu0 %v565
    %581 = vmatpush.msra.mxu0 %v564
    %582 = vmatpush.msra.mxu0 %v563
    %583 = vmatpush.msra.mxu0 %v562
    %584 = vmatpush.msra.mxu0 %v561
    %585 = vmatpush.msra.mxu0 %v560
    %586 = vmatpush.msra.mxu0 %v559
    %587 = vmatpush.msra.mxu0 %v558
    %588 = vmatpush.msra.mxu0 %v557
    %589 = vmatmul.f32.gmra.mxu0 %v552
    %v590 = vpop.f32.mrf.mxu0
    %v591 = vadd.f32 0.0, %v590
    %592 = vmatmul.f32.gmra.mxu0 %v553
    %v593 = vpop.f32.mrf.mxu0
    %v594 = vadd.f32 0.0, %v593
    %595 = vmatmul.f32.gmra.mxu0 %v554
    %v596 = vpop.f32.mrf.mxu0
    %v597 = vadd.f32 0.0, %v596
    %598 = vmatmul.f32.gmra.mxu0 %v555
    %v599 = vpop.f32.mrf.mxu0
    %v600 = vadd.f32 0.0, %v599
    %601 = vdwg.mxu0
    %v602 = vadd.f32 %v533, %v591
    %v603 = vadd.f32 %v536, %v594
    %v604 = vadd.f32 %v539, %v597
    %v605 = vadd.f32 %v542, %v600
    %v606 = vld [vmem:[%s5] sm:$0x1]
    %v607 = vld [vmem:[%s6] sm:$0x1]
    %v608 = vadd.f32 %v602, %v603
    %v609 = vadd.f32 %v608, %v604
    %v610 = vadd.f32 %v609, %v605
    %v611 = vrot.slane %v610, 4
    %v612 = vadd.f32 %v610, %v611
    %v613 = vrot.slane %v612, 2
    %v614 = vadd.f32 %v612, %v613
    %v615 = vrot.slane %v614, 1
    %v616 = vadd.f32 %v614, %v615
    %v617 = vmul.f32 %v602, %v602
    %v618 = vmul.f32 %v603, %v603
    %v619 = vmul.f32 %v604, %v604
    %v620 = vmul.f32 %v605, %v605
    %v621 = vadd.f32 %v617, %v618
    %v622 = vadd.f32 %v621, %v619
    %v623 = vadd.f32 %v622, %v620
    %v624 = vrot.slane %v623, 4
    %v625 = vadd.f32 %v623, %v624
    %v626 = vrot.slane %v625, 2
    %v627 = vadd.f32 %v625, %v626
    %v628 = vrot.slane %v627, 1
    %v629 = vadd.f32 %v627, %v628
    %630 = vmatpush.msra.mxu0 %v112
    %631 = vmatpush.msra.mxu0 %v111
    %632 = vmatpush.msra.mxu0 %v110
    %633 = vmatpush.msra.mxu0 %v109
    %634 = vmatpush.msra.mxu0 %v108
    %635 = vmatpush.msra.mxu0 %v107
    %636 = vmatpush.msra.mxu0 %v106
    %637 = vmatpush.msra.mxu0 %v105
    %638 = vmatpush.msra.mxu0 %v104
    %639 = vmatpush.msra.mxu0 %v103
    %640 = vmatpush.msra.mxu0 %v102
    %641 = vmatpush.msra.mxu0 %v101
    %642 = vmatpush.msra.mxu0 %v100
    %643 = vmatpush.msra.mxu0 %v99
    %644 = vmatpush.msra.mxu0 %v98
    %645 = vmatpush.msra.mxu0 %v97
    %646 = vmatmul.f32.gmra.mxu0 %v616
    %v647 = vpop.f32.mrf.mxu0
    %v648 = vadd.f32 0.0, %v647
    %649 = vdwg.mxu0
    %v650 = vmul.f32 %v648, 0.001953125
    %651 = vmatpush.msra.mxu0 %v112
    %652 = vmatpush.msra.mxu0 %v111
    %653 = vmatpush.msra.mxu0 %v110
    %654 = vmatpush.msra.mxu0 %v109
    %655 = vmatpush.msra.mxu0 %v108
    %656 = vmatpush.msra.mxu0 %v107
    %657 = vmatpush.msra.mxu0 %v106
    %658 = vmatpush.msra.mxu0 %v105
    %659 = vmatpush.msra.mxu0 %v104
    %660 = vmatpush.msra.mxu0 %v103
    %661 = vmatpush.msra.mxu0 %v102
    %662 = vmatpush.msra.mxu0 %v101
    %663 = vmatpush.msra.mxu0 %v100
    %664 = vmatpush.msra.mxu0 %v99
    %665 = vmatpush.msra.mxu0 %v98
    %666 = vmatpush.msra.mxu0 %v97
    %667 = vmatmul.f32.gmra.mxu0 %v629
    %v668 = vpop.f32.mrf.mxu0
    %v669 = vadd.f32 0.0, %v668
    %670 = vdwg.mxu0
    %v671 = vmul.f32 %v669, 0.001953125
    %v672 = vmul.f32 %v650, %v650
    %v673 = vsub.f32 %v671, %v672
    %v674 = vadd.f32 %v673, 0.001
    %v675 = vrsqrt.pop %v674
    %v676 = vmul.f32 %v675, %v674
    %v677 = vmul.f32 %v676, %v675
    %v678 = vmul.f32 0.5, %v677
    %v679 = vsub.f32 1.5, %v678
    %v680 = vmul.f32 %v675, %v679
    %vm681 = vweird.f32 %v674
    %vm682 = vweird.f32 %v675
    %vm683 = vmor %vm681, %vm682
    %v684 = vsel %vm683, %v675, %v680
    %v685 = vmul.f32 %v606, %v684
    %v686 = vmul.f32 %v685, %v650
    %v687 = vsub.f32 %v607, %v686
    %v689 = vperm.slane %v685, 0
    %v691 = vmul.f32 %v602, %v689
    %v692 = vmul.f32 %v603, %v689
    %v693 = vmul.f32 %v604, %v689
    %v694 = vmul.f32 %v605, %v689
    %v696 = vperm.slane %v687, 0
    %v698 = vadd.f32 %v691, %v696
    %v699 = vadd.f32 %v692, %v696
    %v700 = vadd.f32 %v693, %v696
    %v701 = vadd.f32 %v694, %v696
    %v702 = vadd.f32 %v698, %v93
    %v703 = vadd.f32 %v699, %v94
    %v704 = vadd.f32 %v700, %v95
    %v705 = vadd.f32 %v701, %v96
    %v706 = vmax.f32 %v702, 0.0
    %v707 = vmax.f32 %v703, 0.0
    %v708 = vmax.f32 %v704, 0.0
    %v709 = vmax.f32 %v705, 0.0
    %710 = vst [vmem:[#allocation10] sm:$0xff] %v706
    %711 = vst [vmem:[#allocation10 + $0x8] sm:$0xff] %v707
    %712 = vst [vmem:[#allocation10 + $0x10] sm:$0xff] %v708
    %713 = vst [vmem:[#allocation10 + $0x18] sm:$0xff] %v709
    // Predicated region
    $region50: #{tpu_custom_call.1} parent=1 // pred_check
      _
    $region51: #{tpu_custom_call.1} parent=1 // pred_check_branch
      %715 = sbr.rel (0) target = $region53
    $region52: #{tpu_custom_call.1} parent=1 // pred_region
      %717 = vsyncadd [#allocation4], 0
      %s718 = sshll.u32 [#allocation10], 4
      %s719 = int_to_ptr.vmem [resolvable:$true] %s718
      %s720 = sshll.u32 %s8, 4
      %s721 = int_to_ptr.hbm [resolvable:$true] %s720
      %726 = dma.vmem_to_hbm [thread:$0]  %s719, 512, %s721, [#allocation4], 128, 128, 8
    $region53: #{tpu_custom_call.1} parent=1 // pred_fallthru
      _
    // Predicated region
    $region54: #{tpu_custom_call.1} parent=1 // pred_check
      _
    $region55: #{tpu_custom_call.1} parent=1 // pred_check_branch
      %728 = sbr.rel (0) target = $region57
    $region56: #{tpu_custom_call.1} parent=1 // pred_region
      %730 = dma.done [#allocation4], 512
    $region57: #{tpu_custom_call.1} parent=1 // pred_fallthru
      _
    %731 = vsyncpa [#allocation3], 1
    %732 = vsyncpa [#allocation6], 1
    %733 = vsyncpa [#allocation9], 1
    %734 = vsyncpa [#allocation4], 1

</llo_original>
